<compile_context>
chip_gen: v7x
topology: tpu7x:2x2x1
jax: 0.10.0
libtpu: 0.0.40
codegen_flags: <defaults>
</compile_context>

<pallas_src>
import functools

import jax
import jax.numpy as jnp
from jax import lax
from jax.experimental import pallas as pl
from jax.experimental.pallas import tpu as pltpu

_BN_EPS = 1e-5
_NEG = -1e30    # plain python float -> inlined literal, never a captured const


# --------------------------------------------------------------------------- #
# Kernels
# --------------------------------------------------------------------------- #
def _node_mask(bidx, num_graphs):
    """[TN, G] bool: node n belongs to graph g. Padded nodes (bidx==-1) -> False."""
    gids = lax.broadcasted_iota(jnp.int32, (bidx.shape[0], num_graphs), 1)
    return bidx == gids


def _attention_pool_kernel(bidx_ref, x_ref, w1_ref, b1_ref, w2_ref, b2_ref,
                           pooled_ref, m_sc, l_sc, acc_sc):
    """GlobalAttention pooling with an online (flash-style) segment softmax.

    Per-graph state is carried across node tiles in VMEM scratch with graphs
    on the lane axis (m_sc,l_sc: [1,G]; acc_sc: [H,G]) so the online-softmax
    rescale broadcasts lane-wise; a single [H,G]->[G,H] transpose happens once
    at finalize.
    """
    i = pl.program_id(0)

    @pl.when(i == 0)
    def _init():
        m_sc[...] = jnp.full_like(m_sc, _NEG)
        l_sc[...] = jnp.zeros_like(l_sc)
        acc_sc[...] = jnp.zeros_like(acc_sc)

    x = x_ref[...]                                   # [TN, H]  (bf16)
    bidx = bidx_ref[...]                             # [TN, 1]  int32
    num_graphs = pooled_ref.shape[0]

    mask = _node_mask(bidx, num_graphs)              # [TN, G] bool
    mt = mask.astype(jnp.float32)                    # [TN, G]
    mt_lo = mask.astype(x.dtype)                     # [TN, G] matmul dtype

    # gate_nn(x): Linear (+folded BN) -> ReLU -> Linear(H, 1)
    h = jnp.dot(x, w1_ref[...], preferred_element_type=jnp.float32) + b1_ref[...]
    h = jnp.maximum(h, 0.0)
    # second Linear has a single output lane: VPU multiply + lane reduce
    gate = jnp.sum(h * w2_ref[...], axis=-1, keepdims=True) + b2_ref[...]  # [TN,1]

    # ---- online segment-softmax update ----
    scores = jnp.where(mask, gate, _NEG)             # [TN, G]
    t_max = jnp.max(scores, axis=0, keepdims=True)   # [1, G] tile-local max
    m_old = m_sc[...]
    m_new = jnp.maximum(m_old, t_max)
    alpha = jnp.exp(m_old - m_new)                   # [1, G] rescale of old state

    # per-node running max of its own graph (one-hot gather on the MXU)
    node_max = lax.dot_general(mt, m_new, (((1,), (1,)), ((), ())),
                               preferred_element_type=jnp.float32)         # [TN,1]
    p = jnp.exp(gate - node_max)                     # [TN, 1] per-node exp only

    # denominator: sum_n mt[n, g] * p[n]
    tile_l = lax.dot_general(p, mt, (((0,), (0,)), ((), ())),
                             preferred_element_type=jnp.float32)           # [1, G]
    l_sc[...] = alpha * l_sc[...] + tile_l

    # weighted feature sum: acc[h, g] += sum_n mt[n, g] * p[n] * x[n, h]
    wx = p.astype(x.dtype) * x                                             # [TN,H]
    tile_acc = lax.dot_general(wx, mt_lo, (((0,), (0,)), ((), ())),
                               preferred_element_type=jnp.float32)         # [H, G]
    acc_sc[...] = alpha * acc_sc[...] + tile_acc
    m_sc[...] = m_new

    @pl.when(i == pl.num_programs(0) - 1)
    def _finalize():
        l = l_sc[...]
        l_safe = jnp.where(l > 0.0, l, 1.0)          # empty graphs -> 0, not NaN
        pooled = acc_sc[...] / l_safe                # [H, G]
        pooled_ref[...] = jnp.transpose(pooled, (1, 0)).astype(pooled_ref.dtype)


def _simple_pool_kernel(bidx_ref, x_ref, counts_ref, pooled_ref, *, fun):
    """global_add_pool / global_mean_pool / global_max_pool over node tiles.

    add/mean: one-hot-mask matmul (MXU) accumulated into the resident
    pooled_ref; mean divide happens once on the last tile.
    max: running per-graph maximum accumulated into pooled_ref.
    """
    i = pl.program_id(0)
    last = pl.num_programs(0) - 1
    x = x_ref[...]                                   # [TN, H]
    bidx = bidx_ref[...]                             # [TN, 1]
    num_graphs = pooled_ref.shape[0]

    if fun in ("add", "mean"):
        @pl.when(i == 0)
        def _init():
            pooled_ref[...] = jnp.zeros_like(pooled_ref)

        mt = _node_mask(bidx, num_graphs).astype(x.dtype)       # [TN, G]
        # pooled[g, h] += sum_n mt[n, g] * x[n, h]
        pooled_ref[...] += lax.dot_general(mt, x, (((0,), (0,)), ((), ())),
                                           preferred_element_type=jnp.float32)

        if fun == "mean":
            @pl.when(i == last)
            def _finalize():
                counts = counts_ref[...]                        # [G, 1]
                pooled_ref[...] = pooled_ref[...] / jnp.maximum(counts, 1.0)
    else:  # max
        @pl.when(i == 0)
        def _init():
            pooled_ref[...] = jnp.full_like(pooled_ref, _NEG)

        xf = x.astype(jnp.float32)

        # TODO(synk): with the sorted PyG batch vector this could become a
        # contiguous dynamic-slice segment reduce (scalar-prefetched offsets)
        # instead of a loop over graphs.
        @pl.loop(0, num_graphs)
        def _per_graph(g):
            in_g = bidx == g                                    # [TN, 1]
            masked = jnp.where(in_g, xf, _NEG)                  # [TN, H]
            tile_max = jnp.max(masked, axis=0, keepdims=True)   # [1, H]
            cur = pooled_ref[pl.ds(g, 1), :]
            pooled_ref[pl.ds(g, 1), :] = jnp.maximum(cur, tile_max)

        @pl.when(i == last)
        def _finalize():
            counts = counts_ref[...]
            pooled_ref[...] = jnp.where(counts > 0.0, pooled_ref[...], 0.0)


# --------------------------------------------------------------------------- #
# Module wrapper
# --------------------------------------------------------------------------- #
class GlobalPool:
    """Pallas/TPU forward-pass equivalent of the PyTorch GlobalPool module."""

    def __init__(self, fun, cat_size=False, cat_candidates=False, hidden=0,
                 key=None, node_tile=128, compute_dtype=jnp.bfloat16):
        self.fun = fun
        self.cat_size = cat_size
        self.cat_candidates = cat_candidates
        self.hidden = hidden
        self.node_tile = max(8, int(node_tile))
        self.compute_dtype = compute_dtype
        self.params = None
        self.folded = None
        if fun not in ("mean", "max", "add"):
            # Deterministic synthetic init of gate_nn parameters.
            key = jax.random.PRNGKey(0) if key is None else key
            k1, k2, k3, k4 = jax.random.split(key, 4)
            scale = 1.0 / jnp.sqrt(jnp.float32(hidden))
            w1 = jax.random.uniform(k1, (hidden, hidden), jnp.float32, -scale, scale)
            b1 = jax.random.uniform(k2, (1, hidden), jnp.float32, -scale, scale)
            gamma = jnp.ones((1, hidden), jnp.float32)     # BN weight
            beta = jnp.zeros((1, hidden), jnp.float32)     # BN bias
            rmean = jnp.zeros((1, hidden), jnp.float32)    # BN running_mean
            rvar = jnp.ones((1, hidden), jnp.float32)      # BN running_var
            w2 = jax.random.uniform(k3, (hidden, 1), jnp.float32, -scale, scale)
            b2 = jax.random.uniform(k4, (1, 1), jnp.float32, -scale, scale)
            self.params = (w1, b1, gamma, beta, rmean, rvar, w2, b2)
            # Fold the eval-mode BatchNorm affine into the first Linear (host side).
            bn_scale = gamma * lax.rsqrt(rvar + _BN_EPS)           # [1, H]
            w1f = w1 * bn_scale                                    # [H, H]
            b1f = (b1 - rmean) * bn_scale + beta                   # [1, H]
            self.folded = (w1f, b1f, w2.T, b2)                     # w2.T: [1, H]

    def __call__(self, x, batch_idx, num_graphs):
        n, h = x.shape
        tn = self.node_tile
        n_pad = ((n + tn - 1) // tn) * tn
        g_pad = max(8, ((num_graphs + 7) // 8) * 8)
        cdt = self.compute_dtype

        # glue: pad nodes, cast to compute dtype, per-graph node counts
        x_p = jnp.zeros((n_pad, h), cdt).at[:n].set(x.astype(cdt))
        bidx_p = (jnp.full((n_pad, 1), -1, jnp.int32)
                  .at[:n, 0].set(batch_idx.astype(jnp.int32)))
        counts = (jnp.zeros((g_pad,), jnp.float32)
                  .at[batch_idx].add(1.0))[:, None]                # [G_pad, 1]

        num_tiles = n_pad // tn
        out_shape = jax.ShapeDtypeStruct((g_pad, h), jnp.float32)

        bidx_spec = pl.BlockSpec((tn, 1), lambda i: (i, 0))
        x_spec = pl.BlockSpec((tn, h), lambda i: (i, 0))
        out_spec = pl.BlockSpec((g_pad, h), lambda i: (0, 0))      # resident accumulator

        def full_spec(a):
            nd = a.ndim
            return pl.BlockSpec(a.shape, lambda i, _nd=nd: (0,) * _nd)

        if self.fun in ("mean", "max", "add"):
            kernel = functools.partial(_simple_pool_kernel, fun=self.fun)
            inputs = (bidx_p, x_p, counts)
            in_specs = [bidx_spec, x_spec, full_spec(counts)]
            scratch = []
        else:
            w1f, b1f, w2row, b2 = self.folded
            w1f = w1f.astype(cdt)
            kernel = _attention_pool_kernel
            inputs = (bidx_p, x_p, w1f, b1f, w2row, b2)
            in_specs = [bidx_spec, x_spec, full_spec(w1f), full_spec(b1f),
                        full_spec(w2row), full_spec(b2)]
            scratch = [pltpu.VMEM((1, g_pad), jnp.float32),    # running max
                       pltpu.VMEM((1, g_pad), jnp.float32),    # running denom
                       pltpu.VMEM((h, g_pad), jnp.float32)]    # running weighted sum

        pooled = pl.pallas_call(
            kernel,
            out_shape=out_shape,
            grid_spec=pltpu.PrefetchScalarGridSpec(
                num_scalar_prefetch=0,
                grid=(num_tiles,),
                in_specs=in_specs,
                out_specs=out_spec,
                scratch_shapes=scratch),
            compiler_params=pltpu.CompilerParams(
                dimension_semantics=("arbitrary",),
                vmem_limit_bytes=32 * 1024 * 1024),
        )(*inputs)

        pooled = pooled[:num_graphs]
        if self.cat_size:
            pooled = jnp.concatenate([pooled, counts[:num_graphs]], axis=1)
        # TODO(synk): cat_candidates needs an edge_index gather + scatter_add
        # over edges with edge_attr == 3 (data-dependent gather); not implemented.
        return pooled


# --------------------------------------------------------------------------- #
# Pure-JAX reference (correctness sanity check)
# --------------------------------------------------------------------------- #
def _ref_pool(fun, x, batch_idx, num_graphs, params=None):
    ones = jnp.ones((x.shape[0], 1), jnp.float32)
    sizes = jax.ops.segment_sum(ones, batch_idx, num_segments=num_graphs)
    if fun == "add":
        pooled = jax.ops.segment_sum(x, batch_idx, num_segments=num_graphs)
    elif fun == "mean":
        s = jax.ops.segment_sum(x, batch_idx, num_segments=num_graphs)
        pooled = s / jnp.maximum(sizes, 1.0)
    elif fun == "max":
        pooled = jax.ops.segment_max(x, batch_idx, num_segments=num_graphs)
    else:
        w1, b1, gamma, beta, rmean, rvar, w2, b2 = params
        hdn = x @ w1 + b1
        hdn = (hdn - rmean) * lax.rsqrt(rvar + _BN_EPS) * gamma + beta
        hdn = jnp.maximum(hdn, 0.0)
        gate = (hdn @ w2 + b2)[:, 0]
        gmax = jax.ops.segment_max(gate, batch_idx, num_segments=num_graphs)
        e = jnp.exp(gate - gmax[batch_idx])
        denom = jax.ops.segment_sum(e, batch_idx, num_segments=num_graphs)
        w = e / denom[batch_idx]
        pooled = jax.ops.segment_sum(w[:, None] * x, batch_idx,
                                     num_segments=num_graphs)
    return pooled, sizes


# --------------------------------------------------------------------------- #
if __name__ == "__main__":
    key = jax.random.PRNGKey(0)
    N, H, G = 50, 32, 4                      # nodes, hidden, graphs
    kx, kp = jax.random.split(key)
    x = 0.5 * jax.random.normal(kx, (N, H), jnp.float32)
    # Sorted (PyG-style) graph assignment; every graph non-empty; graph
    # boundaries cross node tiles and N=50 leaves a padded tail at tile=16.
    batch_idx = jnp.asarray([0] * 7 + [1] * 15 + [2] * 9 + [3] * 19, jnp.int32)

    # The kernels compute with bf16 inputs (f32 accumulation); compare against
    # an f32 reference evaluated on the same bf16-rounded node features.
    x_q = x.astype(jnp.bfloat16).astype(jnp.float32)

    for fun in ("attention", "add", "mean", "max"):
        pool = GlobalPool(fun, cat_size=True, hidden=H, key=kp, node_tile=16)
        out = pool(x, batch_idx, G)
        out = jax.block_until_ready(out)
        ref_pooled, ref_sizes = _ref_pool(fun, x_q, batch_idx, G, pool.params)
        ref = jnp.concatenate([ref_pooled, ref_sizes], axis=1)
        assert out.shape == (G, H + 1), (fun, out.shape)
        err = float(jnp.max(jnp.abs(out - ref)))
        assert err < 5e-2, (fun, err)

    print("KERNEL_OK")
</pallas_src>

<mosaic_0001>
module attributes {stable_mosaic.version = 11 : i64} {
  func.func @_attention_pool_kernel(%arg0: i32, %arg1: memref<16x1xi32, #tpu.memory_space<vmem>>, %arg2: memref<16x32xbf16, #tpu.memory_space<vmem>>, %arg3: memref<32x32xbf16, #tpu.memory_space<vmem>>, %arg4: memref<1x32xf32, #tpu.memory_space<vmem>>, %arg5: memref<1x32xf32, #tpu.memory_space<vmem>>, %arg6: memref<1x1xf32, #tpu.memory_space<vmem>>, %arg7: memref<8x32xf32, #tpu.memory_space<vmem>>, %arg8: memref<1x8xf32, #tpu.memory_space<vmem>>, %arg9: memref<1x8xf32, #tpu.memory_space<vmem>>, %arg10: memref<32x8xf32, #tpu.memory_space<vmem>>) attributes {dimension_semantics = [#tpu.dimension_semantics<arbitrary>], iteration_bounds = array<i64: 4>, scalar_prefetch = 0 : i64, scratch_operands = 3 : i64, tpu.core_type = #tpu.core_type<tc>, window_params = [{transform_indices = @transform_0, window_bounds = array<i64: 16, 1>}, {transform_indices = @transform_1, window_bounds = array<i64: 16, 32>}, {pipeline_mode = #tpu.pipeline_mode<synchronous>, transform_indices = @transform_2, window_bounds = array<i64: 32, 32>}, {pipeline_mode = #tpu.pipeline_mode<synchronous>, transform_indices = @transform_3, window_bounds = array<i64: 1, 32>}, {pipeline_mode = #tpu.pipeline_mode<synchronous>, transform_indices = @transform_4, window_bounds = array<i64: 1, 32>}, {pipeline_mode = #tpu.pipeline_mode<synchronous>, transform_indices = @transform_5, window_bounds = array<i64: 1, 1>}, {pipeline_mode = #tpu.pipeline_mode<synchronous>, transform_indices = @transform_6, window_bounds = array<i64: 8, 32>}]} {
    %c0_i32 = arith.constant 0 : i32
    %0 = arith.cmpi eq, %arg0, %c0_i32 : i32
    %1 = arith.extui %0 : i1 to i32
    %c0_i32_0 = arith.constant 0 : i32
    %2 = arith.cmpi ne, %1, %c0_i32_0 : i32
    scf.if %2 {
      %cst_32 = arith.constant -1.000000e+30 : f32
      %59 = vector.broadcast %cst_32 : f32 to vector<1x8xf32>
      %c0_33 = arith.constant 0 : index
      %c0_34 = arith.constant 0 : index
      %60 = vector.load %arg8[%c0_33, %c0_34] : memref<1x8xf32, #tpu.memory_space<vmem>>, vector<1x8xf32>
      tpu.vector_store %arg8[%c0_33, %c0_34], %59 {strides = array<i32>} : memref<1x8xf32, #tpu.memory_space<vmem>>, vector<1x8xf32>,
      %cst_35 = arith.constant 0.000000e+00 : f32
      %61 = vector.broadcast %cst_35 : f32 to vector<1x8xf32>
      %c0_36 = arith.constant 0 : index
      %c0_37 = arith.constant 0 : index
      %62 = vector.load %arg9[%c0_36, %c0_37] : memref<1x8xf32, #tpu.memory_space<vmem>>, vector<1x8xf32>
      tpu.vector_store %arg9[%c0_36, %c0_37], %61 {strides = array<i32>} : memref<1x8xf32, #tpu.memory_space<vmem>>, vector<1x8xf32>,
      %cst_38 = arith.constant 0.000000e+00 : f32
      %63 = vector.broadcast %cst_38 : f32 to vector<32x8xf32>
      %c0_39 = arith.constant 0 : index
      %c0_40 = arith.constant 0 : index
      %64 = vector.load %arg10[%c0_39, %c0_40] : memref<32x8xf32, #tpu.memory_space<vmem>>, vector<32x8xf32>
      tpu.vector_store %arg10[%c0_39, %c0_40], %63 {strides = array<i32>} : memref<32x8xf32, #tpu.memory_space<vmem>>, vector<32x8xf32>,
    } else {
    }
    %c0 = arith.constant 0 : index
    %c0_1 = arith.constant 0 : index
    %3 = vector.load %arg2[%c0, %c0_1] : memref<16x32xbf16, #tpu.memory_space<vmem>>, vector<16x32xbf16>
    %c0_2 = arith.constant 0 : index
    %c0_3 = arith.constant 0 : index
    %4 = vector.load %arg1[%c0_2, %c0_3] : memref<16x1xi32, #tpu.memory_space<vmem>>, vector<16x1xi32>
    %5 = tpu.iota {dimensions = array<i32: 1>} : vector<16x8xi32>
    %6 = vector.broadcast %4 : vector<16x1xi32> to vector<16x8xi32>
    %7 = arith.cmpi eq, %6, %5 : vector<16x8xi32>
    %8 = arith.extui %7 : vector<16x8xi1> to vector<16x8xi32>
    %9 = arith.sitofp %8 : vector<16x8xi32> to vector<16x8xf32>
    %10 = arith.extui %7 : vector<16x8xi1> to vector<16x8xi32>
    %11 = arith.sitofp %10 : vector<16x8xi32> to vector<16x8xf32>
    %12 = arith.truncf %11 : vector<16x8xf32> to vector<16x8xbf16>
    %c0_4 = arith.constant 0 : index
    %c0_5 = arith.constant 0 : index
    %13 = vector.load %arg3[%c0_4, %c0_5] : memref<32x32xbf16, #tpu.memory_space<vmem>>, vector<32x32xbf16>
    %cst = arith.constant dense<0.000000e+00> : vector<16x32xf32>
    %14 = tpu.matmul %3, %13, %cst {dimension_numbers = #tpu.dot_dimension_numbers<[1], [0], [0], [1], [0, 0, 1, 1], [], []>} : vector<16x32xbf16>, vector<32x32xbf16>, vector<16x32xf32> -> vector<16x32xf32>
    %c0_6 = arith.constant 0 : index
    %c0_7 = arith.constant 0 : index
    %15 = vector.load %arg4[%c0_6, %c0_7] : memref<1x32xf32, #tpu.memory_space<vmem>>, vector<1x32xf32>
    %16 = vector.broadcast %15 : vector<1x32xf32> to vector<16x32xf32>
    %17 = arith.addf %14, %16 : vector<16x32xf32>
    %cst_8 = arith.constant 0.000000e+00 : f32
    %18 = vector.broadcast %cst_8 : f32 to vector<16x32xf32>
    %19 = arith.maximumf %17, %18 : vector<16x32xf32>
    %c0_9 = arith.constant 0 : index
    %c0_10 = arith.constant 0 : index
    %20 = vector.load %arg5[%c0_9, %c0_10] : memref<1x32xf32, #tpu.memory_space<vmem>>, vector<1x32xf32>
    %21 = vector.broadcast %20 : vector<1x32xf32> to vector<16x32xf32>
    %22 = arith.mulf %19, %21 : vector<16x32xf32>
    %cst_11 = arith.constant dense<0.000000e+00> : vector<16xf32>
    %23 = vector.multi_reduction <add>, %22, %cst_11 [1] : vector<16x32xf32> to vector<16xf32>
    %24 = vector.shape_cast %23 : vector<16xf32> to vector<16x1xf32>
    %c0_12 = arith.constant 0 : index
    %c0_13 = arith.constant 0 : index
    %25 = vector.load %arg6[%c0_12, %c0_13] : memref<1x1xf32, #tpu.memory_space<vmem>>, vector<1x1xf32>
    %26 = vector.broadcast %25 : vector<1x1xf32> to vector<16x1xf32>
    %27 = arith.addf %24, %26 : vector<16x1xf32>
    %cst_14 = arith.constant -1.000000e+30 : f32
    %28 = vector.shape_cast %27 : vector<16x1xf32> to vector<16x1xf32>
    %29 = vector.broadcast %28 : vector<16x1xf32> to vector<16x8xf32>
    %30 = vector.broadcast %cst_14 : f32 to vector<16x8xf32>
    %31 = arith.select %7, %29, %30 : vector<16x8xi1>, vector<16x8xf32>
    %cst_15 = arith.constant dense<0xFF800000> : vector<8xf32>
    %32 = vector.multi_reduction <maximumf>, %31, %cst_15 [0] : vector<16x8xf32> to vector<8xf32>
    %33 = vector.shape_cast %32 : vector<8xf32> to vector<1x8xf32>
    %c0_16 = arith.constant 0 : index
    %c0_17 = arith.constant 0 : index
    %34 = vector.load %arg8[%c0_16, %c0_17] : memref<1x8xf32, #tpu.memory_space<vmem>>, vector<1x8xf32>
    %35 = arith.maximumf %34, %33 : vector<1x8xf32>
    %36 = arith.subf %34, %35 : vector<1x8xf32>
    %37 = math.exp %36 : vector<1x8xf32>
    %cst_18 = arith.constant dense<0.000000e+00> : vector<16x1xf32>
    %38 = tpu.matmul %9, %35, %cst_18 {dimension_numbers = #tpu.dot_dimension_numbers<[1], [1], [0], [0], [0, 0, 1, 0], [], []>} : vector<16x8xf32>, vector<1x8xf32>, vector<16x1xf32> -> vector<16x1xf32>
    %39 = arith.subf %27, %38 : vector<16x1xf32>
    %40 = math.exp %39 : vector<16x1xf32>
    %cst_19 = arith.constant dense<0.000000e+00> : vector<1x8xf32>
    %41 = tpu.matmul %40, %9, %cst_19 {dimension_numbers = #tpu.dot_dimension_numbers<[0], [0], [1], [1], [0, 1, 1, 1], [], []>} : vector<16x1xf32>, vector<16x8xf32>, vector<1x8xf32> -> vector<1x8xf32>
    %c0_20 = arith.constant 0 : index
    %c0_21 = arith.constant 0 : index
    %42 = vector.load %arg9[%c0_20, %c0_21] : memref<1x8xf32, #tpu.memory_space<vmem>>, vector<1x8xf32>
    %43 = arith.mulf %37, %42 : vector<1x8xf32>
    %44 = arith.addf %43, %41 : vector<1x8xf32>
    %c0_22 = arith.constant 0 : index
    %c0_23 = arith.constant 0 : index
    %45 = vector.load %arg9[%c0_22, %c0_23] : memref<1x8xf32, #tpu.memory_space<vmem>>, vector<1x8xf32>
    tpu.vector_store %arg9[%c0_22, %c0_23], %44 {strides = array<i32>} : memref<1x8xf32, #tpu.memory_space<vmem>>, vector<1x8xf32>,
    %46 = arith.truncf %40 : vector<16x1xf32> to vector<16x1xbf16>
    %47 = vector.broadcast %46 : vector<16x1xbf16> to vector<16x32xbf16>
    %48 = arith.mulf %47, %3 : vector<16x32xbf16>
    %cst_24 = arith.constant dense<0.000000e+00> : vector<32x8xf32>
    %49 = tpu.matmul %48, %12, %cst_24 {dimension_numbers = #tpu.dot_dimension_numbers<[0], [0], [1], [1], [0, 1, 1, 1], [], []>} : vector<16x32xbf16>, vector<16x8xbf16>, vector<32x8xf32> -> vector<32x8xf32>
    %c0_25 = arith.constant 0 : index
    %c0_26 = arith.constant 0 : index
    %50 = vector.load %arg10[%c0_25, %c0_26] : memref<32x8xf32, #tpu.memory_space<vmem>>, vector<32x8xf32>
    %51 = vector.broadcast %37 : vector<1x8xf32> to vector<32x8xf32>
    %52 = arith.mulf %51, %50 : vector<32x8xf32>
    %53 = arith.addf %52, %49 : vector<32x8xf32>
    %c0_27 = arith.constant 0 : index
    %c0_28 = arith.constant 0 : index
    %54 = vector.load %arg10[%c0_27, %c0_28] : memref<32x8xf32, #tpu.memory_space<vmem>>, vector<32x8xf32>
    tpu.vector_store %arg10[%c0_27, %c0_28], %53 {strides = array<i32>} : memref<32x8xf32, #tpu.memory_space<vmem>>, vector<32x8xf32>,
    %c0_29 = arith.constant 0 : index
    %c0_30 = arith.constant 0 : index
    %55 = vector.load %arg8[%c0_29, %c0_30] : memref<1x8xf32, #tpu.memory_space<vmem>>, vector<1x8xf32>
    tpu.vector_store %arg8[%c0_29, %c0_30], %35 {strides = array<i32>} : memref<1x8xf32, #tpu.memory_space<vmem>>, vector<1x8xf32>,
    %c3_i32 = arith.constant 3 : i32
    %56 = arith.cmpi eq, %arg0, %c3_i32 : i32
    %57 = arith.extui %56 : i1 to i32
    %c0_i32_31 = arith.constant 0 : i32
    %58 = arith.cmpi ne, %57, %c0_i32_31 : i32
    scf.if %58 {
      %c0_32 = arith.constant 0 : index
      %c0_33 = arith.constant 0 : index
      %59 = vector.load %arg9[%c0_32, %c0_33] : memref<1x8xf32, #tpu.memory_space<vmem>>, vector<1x8xf32>
      %cst_34 = arith.constant 0.000000e+00 : f32
      %60 = vector.broadcast %cst_34 : f32 to vector<1x8xf32>
      %61 = arith.cmpf ogt, %59, %60 : vector<1x8xf32>
      %cst_35 = arith.constant 1.000000e+00 : f32
      %62 = vector.broadcast %cst_35 : f32 to vector<1x8xf32>
      %63 = arith.select %61, %59, %62 : vector<1x8xi1>, vector<1x8xf32>
      %c0_36 = arith.constant 0 : index
      %c0_37 = arith.constant 0 : index
      %64 = vector.load %arg10[%c0_36, %c0_37] : memref<32x8xf32, #tpu.memory_space<vmem>>, vector<32x8xf32>
      %65 = vector.broadcast %63 : vector<1x8xf32> to vector<32x8xf32>
      %66 = arith.divf %64, %65 : vector<32x8xf32>
      %67 = tpu.transpose %66, [1, 0] : vector<32x8xf32> -> vector<8x32xf32>
      %c0_38 = arith.constant 0 : index
      %c0_39 = arith.constant 0 : index
      %68 = vector.load %arg7[%c0_38, %c0_39] : memref<8x32xf32, #tpu.memory_space<vmem>>, vector<8x32xf32>
      tpu.vector_store %arg7[%c0_38, %c0_39], %67 {strides = array<i32>} : memref<8x32xf32, #tpu.memory_space<vmem>>, vector<8x32xf32>,
    } else {
    }
    return
  }
  func.func @transform_0(%arg0: i32) -> (i32, i32) {
    %c0_i32 = arith.constant 0 : i32
    %c0_i32_0 = arith.constant 0 : i32
    return %arg0, %c0_i32 : i32, i32
  }
  func.func @transform_1(%arg0: i32) -> (i32, i32) {
    %c0_i32 = arith.constant 0 : i32
    %c0_i32_0 = arith.constant 0 : i32
    return %arg0, %c0_i32 : i32, i32
  }
  func.func @transform_2(%arg0: i32) -> (i32, i32) {
    %c0_i32 = arith.constant 0 : i32
    %c0_i32_0 = arith.constant 0 : i32
    %c0_i32_1 = arith.constant 0 : i32
    return %c0_i32, %c0_i32_0 : i32, i32
  }
  func.func @transform_3(%arg0: i32) -> (i32, i32) {
    %c0_i32 = arith.constant 0 : i32
    %c0_i32_0 = arith.constant 0 : i32
    %c0_i32_1 = arith.constant 0 : i32
    return %c0_i32, %c0_i32_0 : i32, i32
  }
  func.func @transform_4(%arg0: i32) -> (i32, i32) {
    %c0_i32 = arith.constant 0 : i32
    %c0_i32_0 = arith.constant 0 : i32
    %c0_i32_1 = arith.constant 0 : i32
    return %c0_i32, %c0_i32_0 : i32, i32
  }
  func.func @transform_5(%arg0: i32) -> (i32, i32) {
    %c0_i32 = arith.constant 0 : i32
    %c0_i32_0 = arith.constant 0 : i32
    %c0_i32_1 = arith.constant 0 : i32
    return %c0_i32, %c0_i32_0 : i32, i32
  }
  func.func @transform_6(%arg0: i32) -> (i32, i32) {
    %c0_i32 = arith.constant 0 : i32
    %c0_i32_0 = arith.constant 0 : i32
    %c0_i32_1 = arith.constant 0 : i32
    return %c0_i32, %c0_i32_0 : i32, i32
  }
}

</mosaic_0001>

<llo_original>
// kernel: tpu_custom_call.1
$region0: #{tpu_custom_call.1}
  #allocation0 [shape = 'u32[]', space=smem, size = 0x4, offset = 0x4, fixed_abs, tag = 'smem constant byte address 0x4 - core index']
  #allocation1 [shape = 'u32[144,128]{1,0:T(1,128)}', space=vmem, size = 0x12000, scoped, tag = 'internal scratch']
  #allocation2 [shape = 'f32[1,8]{1,0:T(1,128)}', space=vmem, size = 0x200, scoped, tag = 'scratch operand']
  #allocation3 [shape = 'f32[1,8]{1,0:T(1,128)}', space=vmem, size = 0x200, scoped, tag = 'scratch operand']
  #allocation4 [shape = 'f32[32,8]{1,0:T(8,128)}', space=vmem, size = 0x4000, scoped, tag = 'scratch operand']
  #allocation5 [shape = 'f32[1,1]{1,0:T(1,128)S(1)}', space=vmem, size = 0x200, scoped, tag = 'scoped memory for tpu_custom_call.1']
  %s0 = inlined_call_operand.vmem [shape: s32[64,1], index: 0, kind: input, shape index: {}]
  %s1 = inlined_call_operand.vmem [shape: bf16[64,32], index: 1, kind: input, shape index: {}]
  %s2 = inlined_call_operand.vmem [shape: bf16[32,32], index: 2, kind: input, shape index: {}]
  %s3 = inlined_call_operand.vmem [shape: f32[1,32], index: 3, kind: input, shape index: {}]
  %s4 = inlined_call_operand.vmem [shape: f32[1,32], index: 4, kind: input, shape index: {}]
  %s5 = inlined_call_operand.<no memory space> [shape: f32[1,1], index: 5, kind: input, shape index: {}]
  %s6 = inlined_call_operand.hbm [shape: f32[8,32], index: 6, kind: output, shape index: {}]
  %s7 = sld [smem:[#allocation0]]
  $region65: #{tpu_custom_call.1} parent=0
    _
  %s9 = ssub.s32 1, %s7
  %s10 = scalar_select 0, %s9, %s7
  %v11 = vstv %s5
  %12 = vst [vmem:[#allocation5] sm:$0x1] %v11
  $region1: #{tpu_custom_call.1} parent=0
    #allocation6 [shape = 'u8[4096]{0}', space=vmem, size = 0x1000, scoped, tag = 'output window, operand 0, single buffered']
    #allocation7 [shape = 's32[2]{0}', space=sflag, size = 0x8, scoped, tag = 'scoped memory for tpu_custom_call.1']
    %13 = vsyncpa [#allocation7], 0
    loop: start=0, step=1, limit=6
    $region2: #{tpu_custom_call.1} parent=1 // loop_pre_header
      _
    $region3: #{tpu_custom_call.1} parent=1 // loop_header
      %s15 = sphi 0, %s19
      %p16 = scmp.ge.s32.totalorder %s15, 6
      %s25 = sphi 0, %s27
      %s28 = sphi 0, %s25
      %s29 = sphi 0, %s28
      %s45 = sphi 0, %s29
      %s51 = sphi 0, %s53
      %s54 = sphi 0, %s51
      %s55 = sphi 0, %s54
      %s71 = sphi 0, %s55
      %s75 = sphi 0, %s75
      %s77 = sphi 0, %s75
      %s78 = sphi 0, %s77
      %s92 = sphi 0, %s78
      %s96 = sphi 0, %s96
      %s98 = sphi 0, %s96
      %s99 = sphi 0, %s98
      %s113 = sphi 0, %s99
      %s117 = sphi 0, %s117
      %s119 = sphi 0, %s117
      %s120 = sphi 0, %s119
      %s134 = sphi 0, %s120
      %s138 = sphi 0, %s138
      %s140 = sphi 0, %s138
      %s141 = sphi 0, %s140
      %s155 = sphi 0, %s141
      %s159 = sphi 0, %s159
      %s161 = sphi 0, %s159
      %s162 = sphi 0, %s161
      %s176 = sphi 0, %s162
    $region4: #{tpu_custom_call.1} parent=1 // loop_header_branch
      %18 = sbr.rel (%p16) target = $region8
    $region5: #{tpu_custom_call.1} parent=1 // loop_body
      %s20 = ssub.s32 %s15, 1
      %s21 = ssub.s32 %s15, 2
      %s22 = sadd.s32 %s15, 1
      %s23 = ssub.s32 %s15, %s22
      %p24 = scmp.eq.s32.totalorder %s23, 0
      %s26 = sadd.s32 %s25, 1
      %s27 = scalar_select %p24, %s25, %s26
      %p30 = pneg %p24
      %p31 = scmp.eq.s32.totalorder %s15, 3
      %p32 = por %p30, %p31
      %p33 = scmp.ne.s32.totalorder %s25, %s28
      %p34 = scmp.eq.s32.totalorder %s15, 0
      %p35 = por %p33, %p34
      %p36 = scmp.ne.s32.totalorder %s25, %s28
      %p37 = scmp.eq.s32.totalorder %s20, 3
      %p38 = por %p36, %p37
      %p39 = scmp.ne.s32.totalorder %s28, %s29
      %p40 = scmp.eq.s32.totalorder %s20, 0
      %p41 = por %p39, %p40
      %p42 = scmp.ne.s32.totalorder %s28, %s29
      %p43 = scmp.eq.s32.totalorder %s21, 3
      %p44 = por %p42, %p43
      %p46 = scmp.ne.s32.totalorder %s29, %s45
      %p47 = scmp.eq.s32.totalorder %s21, 0
      %p48 = por %p46, %p47
      %s49 = ssub.s32 %s15, %s22
      %p50 = scmp.eq.s32.totalorder %s49, 0
      %s52 = sadd.s32 %s51, 1
      %s53 = scalar_select %p50, %s51, %s52
      %p56 = pneg %p50
      %p57 = scmp.eq.s32.totalorder %s15, 3
      %p58 = por %p56, %p57
      %p59 = scmp.ne.s32.totalorder %s51, %s54
      %p60 = scmp.eq.s32.totalorder %s15, 0
      %p61 = por %p59, %p60
      %p62 = scmp.ne.s32.totalorder %s51, %s54
      %p63 = scmp.eq.s32.totalorder %s20, 3
      %p64 = por %p62, %p63
      %p65 = scmp.ne.s32.totalorder %s54, %s55
      %p66 = scmp.eq.s32.totalorder %s20, 0
      %p67 = por %p65, %p66
      %p68 = scmp.ne.s32.totalorder %s54, %s55
      %p69 = scmp.eq.s32.totalorder %s21, 3
      %p70 = por %p68, %p69
      %p72 = scmp.ne.s32.totalorder %s55, %s71
      %p73 = scmp.eq.s32.totalorder %s21, 0
      %p74 = por %p72, %p73
      %s76 = sadd.s32 %s75, 1
      %p79 = scmp.eq.s32.totalorder %s15, 3
      %p80 = scmp.ne.s32.totalorder %s75, %s77
      %p81 = scmp.eq.s32.totalorder %s15, 0
      %p82 = por %p80, %p81
      %p83 = scmp.ne.s32.totalorder %s75, %s77
      %p84 = scmp.eq.s32.totalorder %s20, 3
      %p85 = por %p83, %p84
      %p86 = scmp.ne.s32.totalorder %s77, %s78
      %p87 = scmp.eq.s32.totalorder %s20, 0
      %p88 = por %p86, %p87
      %p89 = scmp.ne.s32.totalorder %s77, %s78
      %p90 = scmp.eq.s32.totalorder %s21, 3
      %p91 = por %p89, %p90
      %p93 = scmp.ne.s32.totalorder %s78, %s92
      %p94 = scmp.eq.s32.totalorder %s21, 0
      %p95 = por %p93, %p94
      %s97 = sadd.s32 %s96, 1
      %p100 = scmp.eq.s32.totalorder %s15, 3
      %p101 = scmp.ne.s32.totalorder %s96, %s98
      %p102 = scmp.eq.s32.totalorder %s15, 0
      %p103 = por %p101, %p102
      %p104 = scmp.ne.s32.totalorder %s96, %s98
      %p105 = scmp.eq.s32.totalorder %s20, 3
      %p106 = por %p104, %p105
      %p107 = scmp.ne.s32.totalorder %s98, %s99
      %p108 = scmp.eq.s32.totalorder %s20, 0
      %p109 = por %p107, %p108
      %p110 = scmp.ne.s32.totalorder %s98, %s99
      %p111 = scmp.eq.s32.totalorder %s21, 3
      %p112 = por %p110, %p111
      %p114 = scmp.ne.s32.totalorder %s99, %s113
      %p115 = scmp.eq.s32.totalorder %s21, 0
      %p116 = por %p114, %p115
      %s118 = sadd.s32 %s117, 1
      %p121 = scmp.eq.s32.totalorder %s15, 3
      %p122 = scmp.ne.s32.totalorder %s117, %s119
      %p123 = scmp.eq.s32.totalorder %s15, 0
      %p124 = por %p122, %p123
      %p125 = scmp.ne.s32.totalorder %s117, %s119
      %p126 = scmp.eq.s32.totalorder %s20, 3
      %p127 = por %p125, %p126
      %p128 = scmp.ne.s32.totalorder %s119, %s120
      %p129 = scmp.eq.s32.totalorder %s20, 0
      %p130 = por %p128, %p129
      %p131 = scmp.ne.s32.totalorder %s119, %s120
      %p132 = scmp.eq.s32.totalorder %s21, 3
      %p133 = por %p131, %p132
      %p135 = scmp.ne.s32.totalorder %s120, %s134
      %p136 = scmp.eq.s32.totalorder %s21, 0
      %p137 = por %p135, %p136
      %s139 = sadd.s32 %s138, 1
      %p142 = scmp.eq.s32.totalorder %s15, 3
      %p143 = scmp.ne.s32.totalorder %s138, %s140
      %p144 = scmp.eq.s32.totalorder %s15, 0
      %p145 = por %p143, %p144
      %p146 = scmp.ne.s32.totalorder %s138, %s140
      %p147 = scmp.eq.s32.totalorder %s20, 3
      %p148 = por %p146, %p147
      %p149 = scmp.ne.s32.totalorder %s140, %s141
      %p150 = scmp.eq.s32.totalorder %s20, 0
      %p151 = por %p149, %p150
      %p152 = scmp.ne.s32.totalorder %s140, %s141
      %p153 = scmp.eq.s32.totalorder %s21, 3
      %p154 = por %p152, %p153
      %p156 = scmp.ne.s32.totalorder %s141, %s155
      %p157 = scmp.eq.s32.totalorder %s21, 0
      %p158 = por %p156, %p157
      %s160 = sadd.s32 %s159, 1
      %p163 = scmp.eq.s32.totalorder %s15, 3
      %p164 = scmp.ne.s32.totalorder %s159, %s161
      %p165 = scmp.eq.s32.totalorder %s15, 0
      %p166 = por %p164, %p165
      %p167 = scmp.ne.s32.totalorder %s159, %s161
      %p168 = scmp.eq.s32.totalorder %s20, 3
      %p169 = por %p167, %p168
      %p170 = scmp.ne.s32.totalorder %s161, %s162
      %p171 = scmp.eq.s32.totalorder %s20, 0
      %p172 = por %p170, %p171
      %p173 = scmp.ne.s32.totalorder %s161, %s162
      %p174 = scmp.eq.s32.totalorder %s21, 3
      %p175 = por %p173, %p174
      %p177 = scmp.ne.s32.totalorder %s162, %s176
      %p178 = scmp.eq.s32.totalorder %s21, 0
      %p179 = por %p177, %p178
      %p180 = scmp.le.s32.totalorder 1, %s15
      %p181 = scmp.lt.s32.totalorder %s15, 5
      %p182 = pnand %p180, %p181
      %p183 = pneg %p182
      // Predicated region
      $region9: #{tpu_custom_call.1} parent=5 // pred_check
        _
      $region10: #{tpu_custom_call.1} parent=5 // pred_check_branch
        %185 = sbr.rel (%p182) target = $region12
      $region11: #{tpu_custom_call.1} parent=5 // pred_region
        %s186 = ssub.s32 %s15, 1
        // Predicated region
        $region13: #{tpu_custom_call.1} parent=11 // pred_check
          %p187 = pneg %p88
        $region14: #{tpu_custom_call.1} parent=11 // pred_check_branch
          %189 = sbr.rel (%p187) target = $region16
        $region15: #{tpu_custom_call.1} parent=11 // pred_region
          _
        $region16: #{tpu_custom_call.1} parent=11 // pred_fallthru
          _
        // Predicated region
        $region17: #{tpu_custom_call.1} parent=11 // pred_check
          %p190 = pneg %p109
        $region18: #{tpu_custom_call.1} parent=11 // pred_check_branch
          %192 = sbr.rel (%p190) target = $region20
        $region19: #{tpu_custom_call.1} parent=11 // pred_region
          _
        $region20: #{tpu_custom_call.1} parent=11 // pred_fallthru
          _
        // Predicated region
        $region21: #{tpu_custom_call.1} parent=11 // pred_check
          %p193 = pneg %p130
        $region22: #{tpu_custom_call.1} parent=11 // pred_check_branch
          %195 = sbr.rel (%p193) target = $region24
        $region23: #{tpu_custom_call.1} parent=11 // pred_region
          _
        $region24: #{tpu_custom_call.1} parent=11 // pred_fallthru
          _
        // Predicated region
        $region25: #{tpu_custom_call.1} parent=11 // pred_check
          %p196 = pneg %p151
        $region26: #{tpu_custom_call.1} parent=11 // pred_check_branch
          %198 = sbr.rel (%p196) target = $region28
        $region27: #{tpu_custom_call.1} parent=11 // pred_region
          _
        $region28: #{tpu_custom_call.1} parent=11 // pred_fallthru
          _
      $region12: #{tpu_custom_call.1} parent=5 // pred_fallthru
        _
      %p199 = scmp.lt.s32.totalorder %s15, 4
      // Predicated region
      $region29: #{tpu_custom_call.1} parent=5 // pred_check
        %p200 = pneg %p199
      $region30: #{tpu_custom_call.1} parent=5 // pred_check_branch
        %202 = sbr.rel (%p200) target = $region32
      $region31: #{tpu_custom_call.1} parent=5 // pred_region
        // Predicated region
        $region33: #{tpu_custom_call.1} parent=31 // pred_check
          %p203 = pneg %p35
        $region34: #{tpu_custom_call.1} parent=31 // pred_check_branch
          %205 = sbr.rel (%p203) target = $region36
        $region35: #{tpu_custom_call.1} parent=31 // pred_region
          %s206 = smul.u32 2, %s15
          %p207 = scmp.lt.s32.totalorder %s206, 7
          %s208 = scalar_select %p207, %s206, 7
          %s209 = smul.addr %s208, 8
          %s210 = scalar_lea.vmem %s0, %s209
          %s211 = smul.u32 2, %s15
        $region36: #{tpu_custom_call.1} parent=31 // pred_fallthru
          _
        // Predicated region
        $region37: #{tpu_custom_call.1} parent=31 // pred_check
          %p212 = pneg %p61
        $region38: #{tpu_custom_call.1} parent=31 // pred_check_branch
          %214 = sbr.rel (%p212) target = $region40
        $region39: #{tpu_custom_call.1} parent=31 // pred_region
          %s215 = smul.u32 2, %s15
          %p216 = scmp.lt.s32.totalorder %s215, 7
          %s217 = scalar_select %p216, %s215, 7
          %s218 = smul.addr %s217, 4
          %s219 = scalar_lea.vmem %s1, %s218
          %s220 = smul.u32 2, %s15
        $region40: #{tpu_custom_call.1} parent=31 // pred_fallthru
          _
      $region32: #{tpu_custom_call.1} parent=5 // pred_fallthru
        _
      %p221 = scmp.le.s32.totalorder 1, %s15
      %p222 = scmp.lt.s32.totalorder %s15, 5
      %p223 = pnand %p221, %p222
      %p224 = pneg %p223
      // Predicated region
      $region41: #{tpu_custom_call.1} parent=5 // pred_check
        _
      $region42: #{tpu_custom_call.1} parent=5 // pred_check_branch
        %226 = sbr.rel (%p223) target = $region44
      $region43: #{tpu_custom_call.1} parent=5 // pred_region
        %s227 = ssub.s32 %s15, 1
        %s228 = smul.u32 2, %s20
        %p229 = scmp.lt.s32.totalorder %s228, 7
        %s230 = scalar_select %p229, %s228, 7
        %s231 = smul.addr %s230, 8
        %s232 = scalar_lea.vmem %s0, %s231
        %p233 = pneg %p41
        %p234 = pneg %p38
        %s235 = smul.u32 2, %s20
        %p236 = scmp.lt.s32.totalorder %s235, 7
        %s237 = scalar_select %p236, %s235, 7
        %s238 = smul.addr %s237, 4
        %s239 = scalar_lea.vmem %s1, %s238
        %p240 = pneg %p67
        %p241 = pneg %p64
        %p242 = pneg %p88
        %p243 = pneg %p85
        %p244 = pneg %p109
        %p245 = pneg %p106
        %p246 = pneg %p130
        %p247 = pneg %p127
        %p248 = pneg %p151
        %p249 = pneg %p148
        %p250 = pneg %p172
        %p251 = pneg %p169
        %s252 = smul.u32 2, %s20
        %p253 = scmp.lt.s32.totalorder %s252, 7
        %s254 = scalar_select %p253, %s252, 7
        %s255 = smul.addr %s254, 8
        %s256 = scalar_lea.vmem %s0, %s255
        %s257 = smul.u32 2, %s20
        %s258 = smul.u32 2, %s20
        %p259 = scmp.lt.s32.totalorder %s258, 7
        %s260 = scalar_select %p259, %s258, 7
        %s261 = smul.addr %s260, 4
        %s262 = scalar_lea.vmem %s1, %s261
        %s263 = smul.u32 2, %s20
        %p265 = scmp.eq.s32.totalorder %s20, 0
        // Predicated region
        $region45: #{tpu_custom_call.1} parent=43 // pred_check
          %p266 = pneg %p265
        $region46: #{tpu_custom_call.1} parent=43 // pred_check_branch
          %268 = sbr.rel (%p266) target = $region48
        $region47: #{tpu_custom_call.1} parent=43 // pred_region
          %vm269 = vcmask 57344
          %270 = vst.msk [vmem:[#allocation2] sm:$0x1] %vm269, -1e+30
          %271 = vst.msk [vmem:[#allocation3] sm:$0x1] %vm269, 0.0
          %vm272 = vcmask 64512
          %273 = vst.msk [vmem:[#allocation4] sm:$0xff] %vm272, 0.0
          %274 = vst.msk [vmem:[#allocation4 + $0x8] sm:$0xff] %vm272, 0.0
          %275 = vst.msk [vmem:[#allocation4 + $0x10] sm:$0xff] %vm272, 0.0
          %276 = vst.msk [vmem:[#allocation4 + $0x18] sm:$0xff] %vm272, 0.0
        $region48: #{tpu_custom_call.1} parent=43 // pred_fallthru
          _
        %v277 = vld [vmem:[%s262] sm:$0xf]
        %v278 = vld [vmem:[%s262 + $0x4] sm:$0xf]
        %v279 = vld [vmem:[%s256] sm:$0xff]
        %v280 = vld [vmem:[%s256 + $0x8] sm:$0xff]
        %v281 = vlaneseq
        %v282 = vand.u32 %v281, 127
        %283 = vset.pattern.permute.xlu0 0
        %284 = vperm.xlu0 %283, %v279
        %v285 = vpop.permute.xlu0 %284
        %286 = vset.pattern.permute.xlu0 0
        %287 = vperm.xlu0 %286, %v280
        %v288 = vpop.permute.xlu0 %287
        %vm289 = vcmp.eq.s32.totalorder %v285, %v282
        %vm290 = vcmp.eq.s32.totalorder %v288, %v282
        %v291 = vsel %vm289, 1, 0
        %v292 = vsel %vm290, 1, 0
        %v293 = vcvt.s32.f32 %v291
        %v294 = vcvt.s32.f32 %v292
        %v295 = vpack.c.bf16 %v294, %v293
        %v296 = vld [vmem:[%s2] sm:$0xf]
        %v297 = vld [vmem:[%s2 + $0x4] sm:$0xf]
        %v298 = vld [vmem:[%s2 + $0x8] sm:$0xf]
        %v299 = vld [vmem:[%s2 + $0xc] sm:$0xf]
        %v300 = vld [vmem:[%s3] sm:$0x1]
        %v302 = vlaneseq
        %v303 = vshrl.u32 %v302, 7
        %v304 = vsub.s32 0, %v303
        %v305 = vrot.slane %v300, %v304
        %v309 = vunpack.c.l.b16 %v277
        %v310 = vunpack.c.l.b16 %v278
        %v311 = vpack.c.b16 %v310, %v309
        %v316 = vunpack.c.l.b16 %v296
        %v317 = vunpack.c.l.b16 %v297
        %v318 = vunpack.c.l.b16 %v298
        %v319 = vunpack.c.l.b16 %v299
        %v320 = vpack.c.b16 %v317, %v316
        %v321 = vpack.c.b16 %v319, %v318
        %vm324 = vcmask 261120
        %v326 = vsel %vm324, %v311, 0
        %328 = vmatprep.subr.bf16.mxu0 0
        %329 = vmatpush1.bf16.msra.mxu0 %v320
        %330 = vmatprep.subr.bf16.mxu0 0
        %331 = vmatpush1.bf16.msra.mxu0 %v321
        %332 = vmatprep.subr.bf16.mxu0 0
        %333 = vmatpush1.bf16.msra.mxu0 0
        %334 = vmatprep.subr.bf16.mxu0 0
        %335 = vmatpush1.bf16.msra.mxu0 0
        %336 = vmatprep.subr.bf16.mxu0 0
        %337 = vmatpush1.bf16.msra.mxu0 0
        %338 = vmatprep.subr.bf16.mxu0 0
        %339 = vmatpush1.bf16.msra.mxu0 0
        %340 = vmatprep.subr.bf16.mxu0 0
        %341 = vmatpush1.bf16.msra.mxu0 0
        %342 = vmatprep.subr.bf16.mxu0 0
        %343 = vmatpush1.bf16.msra.mxu0 0
        %344 = vmatprep.subr.bf16.mxu0 0
        %345 = vmatpush1.bf16.msra.mxu0 0
        %346 = vmatprep.subr.bf16.mxu0 0
        %347 = vmatpush1.bf16.msra.mxu0 0
        %348 = vmatprep.subr.bf16.mxu0 0
        %349 = vmatpush1.bf16.msra.mxu0 0
        %350 = vmatprep.subr.bf16.mxu0 0
        %351 = vmatpush1.bf16.msra.mxu0 0
        %352 = vmatprep.subr.bf16.mxu0 0
        %353 = vmatpush1.bf16.msra.mxu0 0
        %354 = vmatprep.subr.bf16.mxu0 0
        %355 = vmatpush1.bf16.msra.mxu0 0
        %356 = vmatprep.subr.bf16.mxu0 0
        %357 = vmatpush1.bf16.msra.mxu0 0
        %358 = vmatprep.subr.bf16.mxu0 0
        %359 = vmatpush1.bf16.msra.mxu0 0
        %360 = vmatprep.mubr.bf16.mxu0 0
        %361 = vmatmul.mubr.bf16.gmra.mrb[0].mxu0 %v326
        %v362 = vpop.f32.mrb[0].mxu0
        %v363 = vadd.f32 %v305, %v362
        %v364 = vpop.f32.mrb[0].mxu0
        %v365 = vpop.f32.mrb[0].mxu0
        %v366 = vadd.f32 %v305, %v365
        %v367 = vpop.f32.mrb[0].mxu0
        %368 = vdwg.mxu0
        %v369 = vmax.f32 %v363, 0.0
        %v370 = vmax.f32 %v366, 0.0
        %v371 = vld [vmem:[%s4] sm:$0x1]
        %v373 = vlaneseq
        %v374 = vshrl.u32 %v373, 7
        %v375 = vsub.s32 0, %v374
        %v376 = vrot.slane %v371, %v375
        %v378 = vmul.f32 %v369, %v376
        %v379 = vmul.f32 %v370, %v376
        %v380 = vsel %vm324, %v378, 0.0
        %381 = vadd.xlane.f32.xlu0 %v380
        %v382 = vpop.xlane.xlu0 %381
        %v383 = vsel %vm324, %v379, 0.0
        %384 = vadd.xlane.f32.xlu0 %v383
        %v385 = vpop.xlane.xlu0 %384
        %v386 = vld [vmem:[#allocation5] sm:$0x1]
        %v388 = vlaneseq
        %v389 = vshrl.u32 %v388, 7
        %v390 = vsub.s32 0, %v389
        %v391 = vrot.slane %v386, %v390
        %v393 = vadd.f32 %v382, %v391
        %v394 = vadd.f32 %v385, %v391
        %396 = vset.pattern.permute.xlu0 0
        %397 = vperm.xlu0 %396, %v393
        %v398 = vpop.permute.xlu0 %397
        %401 = vset.pattern.permute.xlu0 0
        %402 = vperm.xlu0 %401, %v394
        %v403 = vpop.permute.xlu0 %402
        %v405 = vsel %vm289, %v398, -1e+30
        %v406 = vsel %vm290, %v403, -1e+30
        %vm407 = vcmask 64512
        %v408 = vsel %vm407, %v405, -inf
        %v409 = vsel %vm407, %v406, -inf
        %v410 = vmax.f32 %v408, %v409
        %v411 = vrot.slane %v410, 4
        %v412 = vmax.f32 %v410, %v411
        %v413 = vrot.slane %v412, 2
        %v414 = vmax.f32 %v412, %v413
        %v415 = vrot.slane %v414, 1
        %v416 = vmax.f32 %v414, %v415
        %v417 = vld [vmem:[#allocation2] sm:$0x1]
        %v418 = vmax.f32 %v417, %v416
        %v419 = vsub.f32 %v417, %v418
        %v420 = vmul.f32 %v419, 1.442695
        %v421 = vpow.pop %v420
        %v423 = vlaneseq
        %v424 = vshrl.u32 %v423, 7
        %v425 = vsub.s32 0, %v424
        %v426 = vrot.slane %v418, %v425
        %v428 = vmul.f32 %v293, %v426
        %v429 = vmul.f32 %v294, %v426
        %v430 = vsel %vm407, %v428, 0.0
        %431 = vadd.xlane.f32.xlu0 %v430
        %v432 = vpop.xlane.xlu0 %431
        %v433 = vsel %vm407, %v429, 0.0
        %434 = vadd.xlane.f32.xlu0 %v433
        %v435 = vpop.xlane.xlu0 %434
        %v436 = vsub.f32 %v393, %v432
        %v437 = vsub.f32 %v394, %v435
        %v438 = vmul.f32 %v436, 1.442695
        %v439 = vpow.pop %v438
        %v440 = vmul.f32 %v437, 1.442695
        %v441 = vpow.pop %v440
        %442 = vxpose.xlu0.b32.start [1/16] %v439, 128
        %443 = vxpose.xlu0.b32.cont [2/16] %v441, 128
        %444 = vxpose.xlu0.b32.cont [3/16] 0.0, 128
        %445 = vxpose.xlu0.b32.cont [4/16] 0.0, 128
        %446 = vxpose.xlu0.b32.cont [5/16] 0.0, 128
        %447 = vxpose.xlu0.b32.cont [6/16] 0.0, 128
        %448 = vxpose.xlu0.b32.cont [7/16] 0.0, 128
        %449 = vxpose.xlu0.b32.cont [8/16] 0.0, 128
        %450 = vxpose.xlu0.b32.cont [9/16] 0.0, 128
        %451 = vxpose.xlu0.b32.cont [10/16] 0.0, 128
        %452 = vxpose.xlu0.b32.cont [11/16] 0.0, 128
        %453 = vxpose.xlu0.b32.cont [12/16] 0.0, 128
        %454 = vxpose.xlu0.b32.cont [13/16] 0.0, 128
        %455 = vxpose.xlu0.b32.cont [14/16] 0.0, 128
        %456 = vxpose.xlu0.b32.cont [15/16] 0.0, 128
        %457 = vxpose.xlu0.b32.end [16/16] 0.0, 128
        %v458 = vpop.trf.xlu0
        %v459 = vpop.trf.xlu0
        %v460 = vpop.trf.xlu0
        %v461 = vpop.trf.xlu0
        %v462 = vpop.trf.xlu0
        %v463 = vpop.trf.xlu0
        %v464 = vpop.trf.xlu0
        %v465 = vpop.trf.xlu0
        %v466 = vpop.trf.xlu0
        %v467 = vpop.trf.xlu0
        %v468 = vpop.trf.xlu0
        %v469 = vpop.trf.xlu0
        %v470 = vpop.trf.xlu0
        %v471 = vpop.trf.xlu0
        %v472 = vpop.trf.xlu0
        %v473 = vpop.trf.xlu0
        %vm474 = vcmask 130048
        %v476 = vsel %vm474, %v458, 0
        %478 = vmatprep.subr.mxu0 0.0
        %479 = vmatpush1.msra.mxu0 %v293
        %480 = vmatprep.subr.mxu0 0.0
        %481 = vmatpush1.msra.mxu0 %v294
        %482 = vmatprep.subr.mxu0 0.0
        %483 = vmatpush1.msra.mxu0 0.0
        %484 = vmatprep.subr.mxu0 0.0
        %485 = vmatpush1.msra.mxu0 0.0
        %486 = vmatprep.subr.mxu0 0.0
        %487 = vmatpush1.msra.mxu0 0.0
        %488 = vmatprep.subr.mxu0 0.0
        %489 = vmatpush1.msra.mxu0 0.0
        %490 = vmatprep.subr.mxu0 0.0
        %491 = vmatpush1.msra.mxu0 0.0
        %492 = vmatprep.subr.mxu0 0.0
        %493 = vmatpush1.msra.mxu0 0.0
        %494 = vmatprep.subr.mxu0 0.0
        %495 = vmatpush1.msra.mxu0 0.0
        %496 = vmatprep.subr.mxu0 0.0
        %497 = vmatpush1.msra.mxu0 0.0
        %498 = vmatprep.subr.mxu0 0.0
        %499 = vmatpush1.msra.mxu0 0.0
        %500 = vmatprep.subr.mxu0 0.0
        %501 = vmatpush1.msra.mxu0 0.0
        %502 = vmatprep.subr.mxu0 0.0
        %503 = vmatpush1.msra.mxu0 0.0
        %504 = vmatprep.subr.mxu0 0.0
        %505 = vmatpush1.msra.mxu0 0.0
        %506 = vmatprep.subr.mxu0 0.0
        %507 = vmatpush1.msra.mxu0 0.0
        %508 = vmatprep.subr.mxu0 0.0
        %509 = vmatpush1.msra.mxu0 0.0
        %510 = vmatprep.subr.mxu0 0.0
        %511 = vmatpush1.msra.mxu0 0.0
        %512 = vmatprep.subr.mxu0 0.0
        %513 = vmatpush1.msra.mxu0 0.0
        %514 = vmatprep.subr.mxu0 0.0
        %515 = vmatpush1.msra.mxu0 0.0
        %516 = vmatprep.subr.mxu0 0.0
        %517 = vmatpush1.msra.mxu0 0.0
        %518 = vmatprep.subr.mxu0 0.0
        %519 = vmatpush1.msra.mxu0 0.0
        %520 = vmatprep.subr.mxu0 0.0
        %521 = vmatpush1.msra.mxu0 0.0
        %522 = vmatprep.subr.mxu0 0.0
        %523 = vmatpush1.msra.mxu0 0.0
        %524 = vmatprep.subr.mxu0 0.0
        %525 = vmatpush1.msra.mxu0 0.0
        %526 = vmatprep.subr.mxu0 0.0
        %527 = vmatpush1.msra.mxu0 0.0
        %528 = vmatprep.subr.mxu0 0.0
        %529 = vmatpush1.msra.mxu0 0.0
        %530 = vmatprep.subr.mxu0 0.0
        %531 = vmatpush1.msra.mxu0 0.0
        %532 = vmatprep.subr.mxu0 0.0
        %533 = vmatpush1.msra.mxu0 0.0
        %534 = vmatprep.subr.mxu0 0.0
        %535 = vmatpush1.msra.mxu0 0.0
        %536 = vmatprep.subr.mxu0 0.0
        %537 = vmatpush1.msra.mxu0 0.0
        %538 = vmatprep.subr.mxu0 0.0
        %539 = vmatpush1.msra.mxu0 0.0
        %540 = vmatprep.subr.mxu0 0.0
        %541 = vmatpush1.msra.mxu0 0.0
        %542 = vmatprep.mubr.f32.mxu0 0.0
        %543 = vmatmul.mubr.f32.gmra.mrb[0].mxu0 %v476
        %v544 = vpop.f32.mrb[0].mxu0
        %v545 = vadd.f32 0.0, %v544
        %v546 = vpop.f32.mrb[0].mxu0
        %547 = vdwg.mxu0
        %v548 = vld [vmem:[#allocation3] sm:$0x1]
        %v549 = vmul.f32 %v421, %v548
        %v550 = vadd.f32 %v549, %v545
        %vm551 = vcmask 57344
        %552 = vst.msk [vmem:[#allocation3] sm:$0x1] %vm551, %v550
        %v553 = vpack.c.bf16 %v441, %v439
        %555 = vset.pattern.permute.xlu0 0
        %556 = vperm.xlu0 %555, %v553
        %v557 = vpop.permute.xlu0 %556
        %v560 = vmul.bf16 %v557, %v311
        %561 = vxpose.xlu0.c.b16.start [1/8] %v560, 128
        %562 = vxpose.xlu0.c.b16.cont [2/8] 0, 128
        %563 = vxpose.xlu0.c.b16.cont [3/8] 0, 128
        %564 = vxpose.xlu0.c.b16.cont [4/8] 0, 128
        %565 = vxpose.xlu0.c.b16.cont [5/8] 0, 128
        %566 = vxpose.xlu0.c.b16.cont [6/8] 0, 128
        %567 = vxpose.xlu0.c.b16.cont [7/8] 0, 128
        %568 = vxpose.xlu0.c.b16.end [8/8] 0, 128
        %v569 = vpop.trf.xlu0
        %v570 = vpop.trf.xlu0
        %v571 = vpop.trf.xlu0
        %v572 = vpop.trf.xlu0
        %v573 = vpop.trf.xlu0
        %v574 = vpop.trf.xlu0
        %v575 = vpop.trf.xlu0
        %v576 = vpop.trf.xlu0
        %v578 = vsel %vm474, %v569, 0
        %v581 = vsel %vm474, %v570, 0
        %583 = vmatprep.subr.bf16.mxu0 0
        %584 = vmatpush1.bf16.msra.mxu0 %v295
        %585 = vmatprep.subr.bf16.mxu0 0
        %586 = vmatpush1.bf16.msra.mxu0 0
        %587 = vmatprep.subr.bf16.mxu0 0
        %588 = vmatpush1.bf16.msra.mxu0 0
        %589 = vmatprep.subr.bf16.mxu0 0
        %590 = vmatpush1.bf16.msra.mxu0 0
        %591 = vmatprep.subr.bf16.mxu0 0
        %592 = vmatpush1.bf16.msra.mxu0 0
        %593 = vmatprep.subr.bf16.mxu0 0
        %594 = vmatpush1.bf16.msra.mxu0 0
        %595 = vmatprep.subr.bf16.mxu0 0
        %596 = vmatpush1.bf16.msra.mxu0 0
        %597 = vmatprep.subr.bf16.mxu0 0
        %598 = vmatpush1.bf16.msra.mxu0 0
        %599 = vmatprep.subr.bf16.mxu0 0
        %600 = vmatpush1.bf16.msra.mxu0 0
        %601 = vmatprep.subr.bf16.mxu0 0
        %602 = vmatpush1.bf16.msra.mxu0 0
        %603 = vmatprep.subr.bf16.mxu0 0
        %604 = vmatpush1.bf16.msra.mxu0 0
        %605 = vmatprep.subr.bf16.mxu0 0
        %606 = vmatpush1.bf16.msra.mxu0 0
        %607 = vmatprep.subr.bf16.mxu0 0
        %608 = vmatpush1.bf16.msra.mxu0 0
        %609 = vmatprep.subr.bf16.mxu0 0
        %610 = vmatpush1.bf16.msra.mxu0 0
        %611 = vmatprep.subr.bf16.mxu0 0
        %612 = vmatpush1.bf16.msra.mxu0 0
        %613 = vmatprep.subr.bf16.mxu0 0
        %614 = vmatpush1.bf16.msra.mxu0 0
        %615 = vmatprep.mubr.bf16.mxu0 0
        %616 = vmatmul.mubr.bf16.gmra.mrb[0].mxu0 %v578
        %v617 = vpop.f32.mrb[0].mxu0
        %v618 = vadd.f32 0.0, %v617
        %v619 = vpop.f32.mrb[0].mxu0
        %v620 = vpop.f32.mrb[0].mxu0
        %v621 = vadd.f32 0.0, %v620
        %v622 = vpop.f32.mrb[0].mxu0
        %623 = vmatprep.mubr.bf16.mxu0 0
        %624 = vmatmul.mubr.bf16.gmra.mrb[0].mxu0 %v581
        %v625 = vpop.f32.mrb[0].mxu0
        %v626 = vadd.f32 0.0, %v625
        %v627 = vpop.f32.mrb[0].mxu0
        %v628 = vpop.f32.mrb[0].mxu0
        %v629 = vadd.f32 0.0, %v628
        %v630 = vpop.f32.mrb[0].mxu0
        %631 = vdwg.mxu0
        %v632 = vld [vmem:[#allocation4] sm:$0xff]
        %v633 = vld [vmem:[#allocation4 + $0x8] sm:$0xff]
        %v634 = vld [vmem:[#allocation4 + $0x10] sm:$0xff]
        %v635 = vld [vmem:[#allocation4 + $0x18] sm:$0xff]
        %v637 = vlaneseq
        %v638 = vshrl.u32 %v637, 7
        %v639 = vsub.s32 0, %v638
        %v640 = vrot.slane %v421, %v639
        %v642 = vmul.f32 %v640, %v632
        %v643 = vmul.f32 %v640, %v633
        %v644 = vmul.f32 %v640, %v634
        %v645 = vmul.f32 %v640, %v635
        %v646 = vadd.f32 %v642, %v618
        %v647 = vadd.f32 %v643, %v621
        %v648 = vadd.f32 %v644, %v626
        %v649 = vadd.f32 %v645, %v629
        %650 = vst.msk [vmem:[#allocation4] sm:$0xff] %vm407, %v646
        %651 = vst.msk [vmem:[#allocation4 + $0x8] sm:$0xff] %vm407, %v647
        %652 = vst.msk [vmem:[#allocation4 + $0x10] sm:$0xff] %vm407, %v648
        %653 = vst.msk [vmem:[#allocation4 + $0x18] sm:$0xff] %vm407, %v649
        %654 = vst.msk [vmem:[#allocation2] sm:$0x1] %vm551, %v418
        %p655 = scmp.eq.s32.totalorder %s20, 3
        // Predicated region
        $region49: #{tpu_custom_call.1} parent=43 // pred_check
          %p656 = pneg %p655
        $region50: #{tpu_custom_call.1} parent=43 // pred_check_branch
          %658 = sbr.rel (%p656) target = $region52
        $region51: #{tpu_custom_call.1} parent=43 // pred_region
          %v659 = vld [vmem:[#allocation3] sm:$0x1]
          %vm660 = vcmp.gt.f32.partialorder %v659, 0.0
          %v661 = vsel %vm660, %v659, 1.0
          %v662 = vld [vmem:[#allocation4] sm:$0xff]
          %v663 = vld [vmem:[#allocation4 + $0x8] sm:$0xff]
          %v664 = vld [vmem:[#allocation4 + $0x10] sm:$0xff]
          %v665 = vld [vmem:[#allocation4 + $0x18] sm:$0xff]
          %v667 = vlaneseq
          %v668 = vshrl.u32 %v667, 7
          %v669 = vsub.s32 0, %v668
          %v670 = vrot.slane %v661, %v669
          %v672 = vrcp.pop %v670
          %v673 = vmul.f32 %v662, %v672
          %v674 = vmul.f32 %v663, %v672
          %v675 = vmul.f32 %v664, %v672
          %v676 = vmul.f32 %v665, %v672
          %677 = vxpose.xlu0.b32.start [1/16] %v673, 128
          %678 = vxpose.xlu0.b32.cont [2/16] %v674, 128
          %679 = vxpose.xlu0.b32.cont [3/16] %v675, 128
          %680 = vxpose.xlu0.b32.cont [4/16] %v676, 128
          %681 = vxpose.xlu0.b32.cont [5/16] 0.0, 128
          %682 = vxpose.xlu0.b32.cont [6/16] 0.0, 128
          %683 = vxpose.xlu0.b32.cont [7/16] 0.0, 128
          %684 = vxpose.xlu0.b32.cont [8/16] 0.0, 128
          %685 = vxpose.xlu0.b32.cont [9/16] 0.0, 128
          %686 = vxpose.xlu0.b32.cont [10/16] 0.0, 128
          %687 = vxpose.xlu0.b32.cont [11/16] 0.0, 128
          %688 = vxpose.xlu0.b32.cont [12/16] 0.0, 128
          %689 = vxpose.xlu0.b32.cont [13/16] 0.0, 128
          %690 = vxpose.xlu0.b32.cont [14/16] 0.0, 128
          %691 = vxpose.xlu0.b32.cont [15/16] 0.0, 128
          %692 = vxpose.xlu0.b32.end [16/16] 0.0, 128
          %v693 = vpop.trf.xlu0
          %v694 = vpop.trf.xlu0
          %v695 = vpop.trf.xlu0
          %v696 = vpop.trf.xlu0
          %v697 = vpop.trf.xlu0
          %v698 = vpop.trf.xlu0
          %v699 = vpop.trf.xlu0
          %v700 = vpop.trf.xlu0
          %v701 = vpop.trf.xlu0
          %v702 = vpop.trf.xlu0
          %v703 = vpop.trf.xlu0
          %v704 = vpop.trf.xlu0
          %v705 = vpop.trf.xlu0
          %v706 = vpop.trf.xlu0
          %v707 = vpop.trf.xlu0
          %v708 = vpop.trf.xlu0
          %709 = vst.msk [vmem:[#allocation6] sm:$0xff] %vm324, %v693
        $region52: #{tpu_custom_call.1} parent=43 // pred_fallthru
          _
        // Predicated region
        $region53: #{tpu_custom_call.1} parent=43 // pred_check
          %p710 = pneg %p169
        $region54: #{tpu_custom_call.1} parent=43 // pred_check_branch
          %712 = sbr.rel (%p710) target = $region56
        $region55: #{tpu_custom_call.1} parent=43 // pred_region
          %s714 = ssub.s32 128, 128
          %715 = vsyncadd [#allocation7], %s714
          %s717 = sshll.u32 [#allocation6], 4
          %s718 = int_to_ptr.vmem [resolvable:$true] %s717
          %720 = dma.vmem_to_hbm [thread:$0]  %s718, 128, %s6, [#allocation7]
        $region56: #{tpu_custom_call.1} parent=43 // pred_fallthru
          _
        // Predicated region
        $region57: #{tpu_custom_call.1} parent=43 // pred_check
          %p721 = pneg %p169
        $region58: #{tpu_custom_call.1} parent=43 // pred_check_branch
          %723 = sbr.rel (%p721) target = $region60
        $region59: #{tpu_custom_call.1} parent=43 // pred_region
          %724 = dma.done [#allocation7], 128
        $region60: #{tpu_custom_call.1} parent=43 // pred_fallthru
          _
      $region44: #{tpu_custom_call.1} parent=5 // pred_fallthru
        _
      %p725 = scmp.le.s32.totalorder 2, %s15
      // Predicated region
      $region61: #{tpu_custom_call.1} parent=5 // pred_check
        %p726 = pneg %p725
      $region62: #{tpu_custom_call.1} parent=5 // pred_check_branch
        %728 = sbr.rel (%p726) target = $region64
      $region63: #{tpu_custom_call.1} parent=5 // pred_region
        %s729 = ssub.s32 %s15, 2
      $region64: #{tpu_custom_call.1} parent=5 // pred_fallthru
        _
    $region6: #{tpu_custom_call.1} parent=1 // loop_footer
      %s19 = sadd.s32 1, %s15
    $region7: #{tpu_custom_call.1} parent=1 // loop_footer_branch
      %14 = sbr.rel target = $region3
    $region8: #{tpu_custom_call.1} parent=1 // loop_exit
      _
    %730 = vsyncpa [#allocation7], 1
    %s731 = scalar_lea.sflag [#allocation7], 1
    %732 = vsyncpa %s731, 1

</llo_original>
